<compile_context>
chip_gen: v7x
topology: tpu7x:2x2x1
jax: 0.10.0
libtpu: 0.0.40
codegen_flags: <defaults>
</compile_context>

<pallas_src>
import functools

import jax
import jax.numpy as jnp
from jax.experimental import pallas as pl
from jax.experimental.pallas import tpu as pltpu

EPS = 1e-5  # AdaIN.forward passes self.eps (1e-5), overriding c_norm's default 1e-7


def _adain_kernel(x_ref, y_ref, o_ref, *, nx, ny, low_precision_apply):
    # x_ref: (1, Ct, NXP), y_ref: (1, Ct, NYP), o_ref: (1, Ct, NXP)
    # nx / ny are the *true* (unpadded) spatial extents (static Python ints).
    x = x_ref[...]
    y = y_ref[...]
    nxp = x.shape[-1]
    nyp = y.shape[-1]

    # f32 accumulation for the statistics (no-op cast for f32 inputs).
    xf = x.astype(jnp.float32)
    yf = y.astype(jnp.float32)

    # Pass 1: means. Zero-padded lanes contribute 0 to the sums, and we divide
    # by the true extents, so padding is stats-neutral here.
    x_mean = jnp.sum(xf, axis=-1, keepdims=True) * (1.0 / nx)   # (1, Ct, 1)
    y_mean = jnp.sum(yf, axis=-1, keepdims=True) * (1.0 / ny)

    # Pass 2: centered sum of squares (two-pass variance). The block is
    # already VMEM-resident, so this extra pass is pure VALU work with large
    # slack in this HBM-bound kernel, and it avoids the catastrophic
    # cancellation of the one-pass ssq - n*mean^2 formula. Padded lanes would
    # contribute mean^2 each, so mask them out (static branch).
    if nxp != nx:
        lane_x = jax.lax.broadcasted_iota(jnp.int32, xf.shape, dimension=2)
        xc = jnp.where(lane_x < nx, xf - x_mean, 0.0)
    else:
        xc = xf - x_mean
    if nyp != ny:
        lane_y = jax.lax.broadcasted_iota(jnp.int32, yf.shape, dimension=2)
        yc = jnp.where(lane_y < ny, yf - y_mean, 0.0)
    else:
        yc = yf - y_mean

    # PyTorch Tensor.var(dim=-1) is unbiased (divide by N-1); eps added to var.
    x_var = jnp.sum(xc * xc, axis=-1, keepdims=True) * (1.0 / (nx - 1)) + EPS
    y_var = jnp.sum(yc * yc, axis=-1, keepdims=True) * (1.0 / (ny - 1)) + EPS

    # Fold into per-channel affine; rsqrt/sqrt run on the EUP slot.
    inv_x_std = jax.lax.rsqrt(x_var)
    y_std = jnp.sqrt(y_var)
    scale = y_std * inv_x_std                                   # (1, Ct, 1)
    bias = y_mean - x_mean * scale                              # (1, Ct, 1)

    if low_precision_apply:
        # bf16 inputs on v6e/v7x: stats stay f32, but the per-element FMA and
        # store happen in the storage dtype (halves temporaries / store traffic).
        o_ref[...] = x * scale.astype(x.dtype) + bias.astype(x.dtype)
    else:
        o_ref[...] = (xf * scale + bias).astype(o_ref.dtype)


def _round_up(v, m):
    return ((v + m - 1) // m) * m


def _vmem_caps():
    """(physical VMEM bytes, scoped-limit cap) — generation-aware with a
    conservative fallback (v7x: 64 MiB per TC)."""
    phys = 64 * 1024 * 1024
    try:
        info = pltpu.get_tpu_info()
        phys = int(getattr(info, "vmem_capacity_bytes", phys))
    except Exception:
        pass
    # v7x (64 MiB physical) -> 48 MiB scoped cap; v6e/v5e (128 MiB) -> 64 MiB.
    scoped_cap = min(64 * 1024 * 1024, (phys * 3) // 4)
    return phys, scoped_cap


def _per_channel_peak_bytes(nxp, nyp, itemsize):
    """Peak VMEM bytes per channel row of a block:
    depth-2 pipeline buffers for (x, y, out) in the storage dtype plus ~2 f32
    in-kernel temporaries per input block (xf/centered-x, yf/centered-y)."""
    pipeline = 2 * (2 * nxp + nyp) * itemsize
    temps_f32 = 4 * (2 * nxp + 2 * nyp)
    return pipeline + temps_f32


def _choose_c_tile(bs, ch, nxp, nyp, itemsize, block_budget_bytes):
    """Pick a legal channel tile (multiple of 8, or the full channel extent)
    that (a) fits the real peak-VMEM budget and (b) yields >= ~8 grid steps
    so the double-buffer overlaps DMA with compute and, on v7x, both
    TensorCores are busy even at batch == 1."""
    per_ch = _per_channel_peak_bytes(nxp, nyp, itemsize)
    c_fit = max(1, block_budget_bytes // per_ch)

    min_steps = 8
    c_steps_needed = -(-min_steps // bs)                 # ceil(min_steps / bs)
    if ch >= c_steps_needed:
        c_cap_steps = max(1, ch // c_steps_needed)
    else:
        c_cap_steps = ch                                 # can't reach min_steps

    c_tile = max(1, min(ch, c_fit, c_cap_steps))
    if c_tile >= ch:
        return ch, per_ch                                # full extent: always legal
    if ch >= 8:
        # Multiple of 8 (sublane-aligned); 8 is the minimal legal tiled option
        # even if it exceeds the budget (the wrapper raises vmem_limit then).
        c_tile = max(8, (c_tile // 8) * 8)
    else:
        c_tile = ch
    return c_tile, per_ch


def adain(x, y):
    """AdaIN forward. x: (B, C, H, W), y: (B, C, H', W') with same B, C."""
    assert x.shape[0] == y.shape[0]
    assert x.shape[1] == y.shape[1]
    bs, ch, hx, wx = x.shape
    _, _, hy, wy = y.shape
    nx = hx * wx
    ny = hy * wy
    # Unbiased variance divides by N-1; require at least 2 spatial elements.
    assert nx > 1 and ny > 1, "AdaIN requires H*W > 1 for both inputs"

    itemsize = jnp.dtype(x.dtype).itemsize

    # Lane-dense layout: pad the flattened spatial dim to a multiple of 128 so
    # stores are full-lane (no masked vst.msk). True nx/ny keep feeding the
    # mean / (N-1) divisors inside the kernel.
    nxp = nx if nx % 128 == 0 else _round_up(nx, 128)
    nyp = ny if ny % 128 == 0 else _round_up(ny, 128)

    x_flat = x.reshape(bs, ch, nx)
    y_flat = y.reshape(bs, ch, ny)
    if nxp != nx:
        x_flat = jnp.pad(x_flat, ((0, 0), (0, 0), (0, nxp - nx)))
    if nyp != ny:
        y_flat = jnp.pad(y_flat, ((0, 0), (0, 0), (0, nyp - ny)))

    phys_vmem, scoped_cap = _vmem_caps()
    block_budget = (scoped_cap * 3) // 4                 # headroom inside the scoped limit
    c_tile, per_ch = _choose_c_tile(bs, ch, nxp, nyp, itemsize, block_budget)
    num_c_tiles = pl.cdiv(ch, c_tile)

    # Raise the scoped VMEM limit consistently with the real peak of the
    # chosen tile (image-scale spatial extents with the minimal 8-channel tile).
    # TODO(synk): add a spatial-split stats+apply path (extra "arbitrary" grid
    # axis over nx accumulating into scratch) for blocks that cannot fit v7x's
    # 64 MiB physical VMEM even at c_tile == 8.
    required = c_tile * per_ch + (2 << 20)
    vmem_limit = int(max(scoped_cap, min(required, (phys_vmem * 9) // 10)))

    # bf16 apply path only where the VPU supports bf16 (v6e/v7x); v5e keeps f32.
    low_prec = jnp.dtype(x.dtype) == jnp.dtype(jnp.bfloat16)
    try:
        kind = jax.devices()[0].device_kind.lower()
        if ("v5 lite" in kind) or ("v5e" in kind) or ("v5lite" in kind):
            low_prec = False
    except Exception:
        pass

    kernel = functools.partial(
        _adain_kernel, nx=nx, ny=ny, low_precision_apply=low_prec)

    cost = pl.CostEstimate(
        flops=bs * ch * (6 * nx + 4 * ny),
        transcendentals=2 * bs * ch,
        bytes_accessed=itemsize * (2 * bs * ch * nxp + bs * ch * nyp),
    )

    out_flat = pl.pallas_call(
        kernel,
        out_shape=jax.ShapeDtypeStruct((bs, ch, nxp), x.dtype),
        grid_spec=pltpu.PrefetchScalarGridSpec(
            num_scalar_prefetch=0,
            grid=(bs, num_c_tiles),
            in_specs=[
                pl.BlockSpec((1, c_tile, nxp), lambda b, c: (b, c, 0)),
                pl.BlockSpec((1, c_tile, nyp), lambda b, c: (b, c, 0)),
            ],
            out_specs=pl.BlockSpec((1, c_tile, nxp), lambda b, c: (b, c, 0)),
        ),
        compiler_params=pltpu.CompilerParams(
            # Both grid axes independent -> megacore / dual-TC sharding.
            dimension_semantics=("parallel", "parallel"),
            vmem_limit_bytes=vmem_limit,
        ),
        cost_estimate=cost,
    )(x_flat, y_flat)

    if nxp != nx:
        out_flat = out_flat[:, :, :nx]
    return out_flat.reshape(bs, ch, hx, wx)


def _adain_ref(x, y):
    """Pure-JAX reference mirroring the PyTorch module exactly (two-pass stats)."""
    bs, ch = x.shape[:2]
    x_ = x.reshape(bs, ch, -1)
    y_ = y.reshape(bs, ch, -1)

    def c_norm(t):
        n = t.shape[-1]
        mean = jnp.mean(t, axis=-1)
        var = jnp.sum((t - mean[..., None]) ** 2, axis=-1) / (n - 1) + EPS
        std = jnp.sqrt(var)
        return std.reshape(bs, ch, 1, 1), mean.reshape(bs, ch, 1, 1)

    x_std, x_mean = c_norm(x_)
    y_std, y_mean = c_norm(y_)
    return (x - x_mean) / x_std * y_std + y_mean


if __name__ == "__main__":
    key = jax.random.PRNGKey(0)
    kx, ky = jax.random.split(key)

    # Small shapes consistent with the module's NCHW convention.
    x = jax.random.normal(kx, (2, 4, 16, 16), dtype=jnp.float32)
    y = jax.random.normal(ky, (2, 4, 16, 16), dtype=jnp.float32) * 2.0 + 0.5

    out = adain(x, y)
    jax.block_until_ready(out)

    ref = _adain_ref(x, y)
    assert out.shape == x.shape
    assert jnp.allclose(out, ref, atol=1e-4, rtol=1e-4), "mismatch vs reference"

    print("KERNEL_OK")
</pallas_src>

<mosaic_0001>
module attributes {stable_mosaic.version = 11 : i64} {
  func.func @_adain_kernel(%arg0: i32, %arg1: i32, %arg2: memref<1x4x256xf32, #tpu.memory_space<vmem>>, %arg3: memref<1x4x256xf32, #tpu.memory_space<vmem>>, %arg4: memref<1x4x256xf32, #tpu.memory_space<vmem>>) attributes {dimension_semantics = [#tpu.dimension_semantics<parallel>, #tpu.dimension_semantics<parallel>], iteration_bounds = array<i64: 2, 1>, scalar_prefetch = 0 : i64, scratch_operands = 0 : i64, tpu.core_type = #tpu.core_type<tc>, window_params = [{transform_indices = @transform_0, window_bounds = array<i64: 1, 4, 256>}, {transform_indices = @transform_1, window_bounds = array<i64: 1, 4, 256>}, {transform_indices = @transform_2, window_bounds = array<i64: 1, 4, 256>}]} {
    %c0 = arith.constant 0 : index
    %c0_0 = arith.constant 0 : index
    %c0_1 = arith.constant 0 : index
    %0 = vector.load %arg2[%c0, %c0_0, %c0_1] : memref<1x4x256xf32, #tpu.memory_space<vmem>>, vector<1x4x256xf32>
    %c0_2 = arith.constant 0 : index
    %c0_3 = arith.constant 0 : index
    %c0_4 = arith.constant 0 : index
    %1 = vector.load %arg3[%c0_2, %c0_3, %c0_4] : memref<1x4x256xf32, #tpu.memory_space<vmem>>, vector<1x4x256xf32>
    %cst = arith.constant dense<0.000000e+00> : vector<1x4xf32>
    %2 = vector.multi_reduction <add>, %0, %cst [2] : vector<1x4x256xf32> to vector<1x4xf32>
    %3 = vector.shape_cast %2 : vector<1x4xf32> to vector<1x4x1xf32>
    %cst_5 = arith.constant 3.906250e-03 : f32
    %4 = vector.broadcast %cst_5 : f32 to vector<1x4x1xf32>
    %5 = arith.mulf %3, %4 : vector<1x4x1xf32>
    %cst_6 = arith.constant dense<0.000000e+00> : vector<1x4xf32>
    %6 = vector.multi_reduction <add>, %1, %cst_6 [2] : vector<1x4x256xf32> to vector<1x4xf32>
    %7 = vector.shape_cast %6 : vector<1x4xf32> to vector<1x4x1xf32>
    %cst_7 = arith.constant 3.906250e-03 : f32
    %8 = vector.broadcast %cst_7 : f32 to vector<1x4x1xf32>
    %9 = arith.mulf %7, %8 : vector<1x4x1xf32>
    %10 = vector.broadcast %5 : vector<1x4x1xf32> to vector<1x4x256xf32>
    %11 = arith.subf %0, %10 : vector<1x4x256xf32>
    %12 = vector.broadcast %9 : vector<1x4x1xf32> to vector<1x4x256xf32>
    %13 = arith.subf %1, %12 : vector<1x4x256xf32>
    %14 = arith.mulf %11, %11 : vector<1x4x256xf32>
    %cst_8 = arith.constant dense<0.000000e+00> : vector<1x4xf32>
    %15 = vector.multi_reduction <add>, %14, %cst_8 [2] : vector<1x4x256xf32> to vector<1x4xf32>
    %16 = vector.shape_cast %15 : vector<1x4xf32> to vector<1x4x1xf32>
    %cst_9 = arith.constant 0.00392156886 : f32
    %17 = vector.broadcast %cst_9 : f32 to vector<1x4x1xf32>
    %18 = arith.mulf %16, %17 : vector<1x4x1xf32>
    %cst_10 = arith.constant 9.99999974E-6 : f32
    %19 = vector.broadcast %cst_10 : f32 to vector<1x4x1xf32>
    %20 = arith.addf %18, %19 : vector<1x4x1xf32>
    %21 = arith.mulf %13, %13 : vector<1x4x256xf32>
    %cst_11 = arith.constant dense<0.000000e+00> : vector<1x4xf32>
    %22 = vector.multi_reduction <add>, %21, %cst_11 [2] : vector<1x4x256xf32> to vector<1x4xf32>
    %23 = vector.shape_cast %22 : vector<1x4xf32> to vector<1x4x1xf32>
    %cst_12 = arith.constant 0.00392156886 : f32
    %24 = vector.broadcast %cst_12 : f32 to vector<1x4x1xf32>
    %25 = arith.mulf %23, %24 : vector<1x4x1xf32>
    %cst_13 = arith.constant 9.99999974E-6 : f32
    %26 = vector.broadcast %cst_13 : f32 to vector<1x4x1xf32>
    %27 = arith.addf %25, %26 : vector<1x4x1xf32>
    %28 = math.rsqrt %20 : vector<1x4x1xf32>
    %29 = math.sqrt %27 : vector<1x4x1xf32>
    %30 = arith.mulf %29, %28 : vector<1x4x1xf32>
    %31 = arith.mulf %5, %30 : vector<1x4x1xf32>
    %32 = arith.subf %9, %31 : vector<1x4x1xf32>
    %33 = vector.broadcast %30 : vector<1x4x1xf32> to vector<1x4x256xf32>
    %34 = arith.mulf %0, %33 : vector<1x4x256xf32>
    %35 = vector.broadcast %32 : vector<1x4x1xf32> to vector<1x4x256xf32>
    %36 = arith.addf %34, %35 : vector<1x4x256xf32>
    %c0_14 = arith.constant 0 : index
    %c0_15 = arith.constant 0 : index
    %c0_16 = arith.constant 0 : index
    %37 = vector.load %arg4[%c0_14, %c0_15, %c0_16] : memref<1x4x256xf32, #tpu.memory_space<vmem>>, vector<1x4x256xf32>
    tpu.vector_store %arg4[%c0_14, %c0_15, %c0_16], %36 {strides = array<i32>} : memref<1x4x256xf32, #tpu.memory_space<vmem>>, vector<1x4x256xf32>,
    return
  }
  func.func @transform_0(%arg0: i32, %arg1: i32) -> (i32, i32, i32) {
    %c0_i32 = arith.constant 0 : i32
    %c0_i32_0 = arith.constant 0 : i32
    return %arg0, %arg1, %c0_i32 : i32, i32, i32
  }
  func.func @transform_1(%arg0: i32, %arg1: i32) -> (i32, i32, i32) {
    %c0_i32 = arith.constant 0 : i32
    %c0_i32_0 = arith.constant 0 : i32
    return %arg0, %arg1, %c0_i32 : i32, i32, i32
  }
  func.func @transform_2(%arg0: i32, %arg1: i32) -> (i32, i32, i32) {
    %c0_i32 = arith.constant 0 : i32
    %c0_i32_0 = arith.constant 0 : i32
    return %arg0, %arg1, %c0_i32 : i32, i32, i32
  }
}

</mosaic_0001>

<llo_original>
// kernel: tpu_custom_call.1
$region0: #{tpu_custom_call.1}
  #allocation0 [shape = 'u32[]', space=smem, size = 0x4, offset = 0x4, fixed_abs, tag = 'smem constant byte address 0x4 - core index']
  #allocation1 [shape = 'u32[144,128]{1,0:T(1,128)}', space=vmem, size = 0x12000, scoped, tag = 'internal scratch']
  %s0 = inlined_call_operand.hbm [shape: f32[2,4,256], index: 0, kind: input, shape index: {}]
  %s1 = inlined_call_operand.hbm [shape: f32[2,4,256], index: 1, kind: input, shape index: {}]
  %s2 = inlined_call_operand.hbm [shape: f32[2,4,256], index: 2, kind: output, shape index: {}]
  %s3 = sld [smem:[#allocation0]]
  $region49: #{tpu_custom_call.1} parent=0
    _
  %s5 = ssub.s32 1, %s3
  %s6 = scalar_select 0, %s5, %s3
  $region1: #{tpu_custom_call.1} parent=0
    #allocation2 [shape = 'u8[8192]{0}', space=vmem, size = 0x2000, scoped, tag = 'input window, operand 0']
    #allocation3 [shape = 's32[2]{0}', space=sflag, size = 0x8, scoped, tag = 'scoped memory for tpu_custom_call.1']
    #allocation4 [shape = 's32[2]{0}', space=sflag, size = 0x8, scoped, tag = 'scoped memory for tpu_custom_call.1']
    #allocation5 [shape = 'u8[8192]{0}', space=vmem, size = 0x2000, scoped, tag = 'input window, operand 1']
    #allocation6 [shape = 's32[2]{0}', space=sflag, size = 0x8, scoped, tag = 'scoped memory for tpu_custom_call.1']
    #allocation7 [shape = 'u8[8192]{0}', space=vmem, size = 0x2000, scoped, tag = 'output window, operand 0']
    %7 = vsyncpa [#allocation3], 0
    %s8 = scalar_lea.sflag [#allocation3], 1
    %9 = vsyncpa %s8, 0
    %10 = vsyncpa [#allocation6], 0
    %s11 = scalar_lea.sflag [#allocation6], 1
    %12 = vsyncpa %s11, 0
    %13 = vsyncpa [#allocation4], 0
    %s14 = scalar_lea.sflag [#allocation4], 1
    %15 = vsyncpa %s14, 0
    loop: start=0, step=1, limit=4
    $region2: #{tpu_custom_call.1} parent=1 // loop_pre_header
      _
    $region3: #{tpu_custom_call.1} parent=1 // loop_header
      %s17 = sphi 0, %s21
      %p18 = scmp.ge.s32.totalorder %s17, 4
      %s24 = sphi 0, %s36
      %s25 = sphi 0, %s32
      %s26 = sphi 0, %s24
      %s27 = sphi 0, %s25
      %s28 = sphi 0, %s26
      %s29 = sphi 0, %s27
      %s41 = sphi 0, %s43
      %s44 = sphi 0, %s41
      %s45 = sphi 0, %s44
      %s61 = sphi 0, %s45
      %s69 = sphi 0, %s71
      %s72 = sphi 0, %s69
      %s73 = sphi 0, %s72
      %s89 = sphi 0, %s73
      %s97 = sphi 0, %s99
      %s100 = sphi 0, %s97
      %s101 = sphi 0, %s100
      %s117 = sphi 0, %s101
    $region4: #{tpu_custom_call.1} parent=1 // loop_header_branch
      %20 = sbr.rel (%p18) target = $region8
    $region5: #{tpu_custom_call.1} parent=1 // loop_body
      %s22 = ssub.s32 %s17, 1
      %s23 = ssub.s32 %s17, 2
      %s30 = sadd.s32 1, %s25
      %p31 = scmp.ge.s32.totalorder %s30, 1
      %s32 = scalar_select %p31, 0, %s30
      %s33 = sadd.s32 1, %s24
      %s34 = scalar_select %p31, %s33, %s24
      %p35 = scmp.ge.s32.totalorder %s34, 2
      %s36 = scalar_select %p35, 0, %s34
      %s37 = ssub.s32 %s24, %s36
      %s38 = ssub.s32 %s25, %s32
      %s39 = sor.u32 %s37, %s38
      %p40 = scmp.eq.s32.totalorder %s39, 0
      %s42 = sadd.s32 %s41, 1
      %s43 = scalar_select %p40, %s41, %s42
      %p46 = pneg %p40
      %p47 = scmp.eq.s32.totalorder %s17, 1
      %p48 = por %p46, %p47
      %p49 = scmp.ne.s32.totalorder %s41, %s44
      %p50 = scmp.eq.s32.totalorder %s17, 0
      %p51 = por %p49, %p50
      %p52 = scmp.ne.s32.totalorder %s41, %s44
      %p53 = scmp.eq.s32.totalorder %s22, 1
      %p54 = por %p52, %p53
      %p55 = scmp.ne.s32.totalorder %s44, %s45
      %p56 = scmp.eq.s32.totalorder %s22, 0
      %p57 = por %p55, %p56
      %p58 = scmp.ne.s32.totalorder %s44, %s45
      %p59 = scmp.eq.s32.totalorder %s23, 1
      %p60 = por %p58, %p59
      %p62 = scmp.ne.s32.totalorder %s45, %s61
      %p63 = scmp.eq.s32.totalorder %s23, 0
      %p64 = por %p62, %p63
      %s65 = ssub.s32 %s24, %s36
      %s66 = ssub.s32 %s25, %s32
      %s67 = sor.u32 %s65, %s66
      %p68 = scmp.eq.s32.totalorder %s67, 0
      %s70 = sadd.s32 %s69, 1
      %s71 = scalar_select %p68, %s69, %s70
      %p74 = pneg %p68
      %p75 = scmp.eq.s32.totalorder %s17, 1
      %p76 = por %p74, %p75
      %p77 = scmp.ne.s32.totalorder %s69, %s72
      %p78 = scmp.eq.s32.totalorder %s17, 0
      %p79 = por %p77, %p78
      %p80 = scmp.ne.s32.totalorder %s69, %s72
      %p81 = scmp.eq.s32.totalorder %s22, 1
      %p82 = por %p80, %p81
      %p83 = scmp.ne.s32.totalorder %s72, %s73
      %p84 = scmp.eq.s32.totalorder %s22, 0
      %p85 = por %p83, %p84
      %p86 = scmp.ne.s32.totalorder %s72, %s73
      %p87 = scmp.eq.s32.totalorder %s23, 1
      %p88 = por %p86, %p87
      %p90 = scmp.ne.s32.totalorder %s73, %s89
      %p91 = scmp.eq.s32.totalorder %s23, 0
      %p92 = por %p90, %p91
      %s93 = ssub.s32 %s24, %s36
      %s94 = ssub.s32 %s25, %s32
      %s95 = sor.u32 %s93, %s94
      %p96 = scmp.eq.s32.totalorder %s95, 0
      %s98 = sadd.s32 %s97, 1
      %s99 = scalar_select %p96, %s97, %s98
      %p102 = pneg %p96
      %p103 = scmp.eq.s32.totalorder %s17, 1
      %p104 = por %p102, %p103
      %p105 = scmp.ne.s32.totalorder %s97, %s100
      %p106 = scmp.eq.s32.totalorder %s17, 0
      %p107 = por %p105, %p106
      %p108 = scmp.ne.s32.totalorder %s97, %s100
      %p109 = scmp.eq.s32.totalorder %s22, 1
      %p110 = por %p108, %p109
      %p111 = scmp.ne.s32.totalorder %s100, %s101
      %p112 = scmp.eq.s32.totalorder %s22, 0
      %p113 = por %p111, %p112
      %p114 = scmp.ne.s32.totalorder %s100, %s101
      %p115 = scmp.eq.s32.totalorder %s23, 1
      %p116 = por %p114, %p115
      %p118 = scmp.ne.s32.totalorder %s101, %s117
      %p119 = scmp.eq.s32.totalorder %s23, 0
      %p120 = por %p118, %p119
      %p121 = scmp.le.s32.totalorder 1, %s17
      %p122 = scmp.lt.s32.totalorder %s17, 3
      %p123 = pnand %p121, %p122
      %p124 = pneg %p123
      // Predicated region
      $region9: #{tpu_custom_call.1} parent=5 // pred_check
        _
      $region10: #{tpu_custom_call.1} parent=5 // pred_check_branch
        %126 = sbr.rel (%p123) target = $region12
      $region11: #{tpu_custom_call.1} parent=5 // pred_region
        %s127 = ssub.s32 %s17, 1
      $region12: #{tpu_custom_call.1} parent=5 // pred_fallthru
        _
      %p128 = scmp.lt.s32.totalorder %s17, 2
      // Predicated region
      $region13: #{tpu_custom_call.1} parent=5 // pred_check
        %p129 = pneg %p128
      $region14: #{tpu_custom_call.1} parent=5 // pred_check_branch
        %131 = sbr.rel (%p129) target = $region16
      $region15: #{tpu_custom_call.1} parent=5 // pred_region
        // Predicated region
        $region17: #{tpu_custom_call.1} parent=15 // pred_check
          %p132 = pneg %p51
        $region18: #{tpu_custom_call.1} parent=15 // pred_check_branch
          %134 = sbr.rel (%p132) target = $region20
        $region19: #{tpu_custom_call.1} parent=15 // pred_region
          %s135 = sand.u32 %s41, 1
          %s136 = scalar_lea.sflag [#allocation3], %s135
          %s137 = sand.u32 %s41, 1
          %s138 = smul.addr %s137, 8
          %s139 = scalar_lea.vmem [#allocation2], %s138
          %s141 = ssub.s32 128, 128
          %142 = vsyncadd %s136, %s141
          %s143 = smul.addr %s25, 2
          %s144 = smul.addr %s24, 2
          %s145 = sadd.s32 %s143, %s144
          %s146 = smul.addr %s145, 64
          %s147 = scalar_lea.hbm %s0, %s146
          %s149 = sshll.u32 %s139, 4
          %s150 = int_to_ptr.vmem [resolvable:$true] %s149
          %152 = dma.hbm_to_vmem [thread:$0]  %s147, 128, %s150, %s136
        $region20: #{tpu_custom_call.1} parent=15 // pred_fallthru
          _
        // Predicated region
        $region21: #{tpu_custom_call.1} parent=15 // pred_check
          %p153 = pneg %p79
        $region22: #{tpu_custom_call.1} parent=15 // pred_check_branch
          %155 = sbr.rel (%p153) target = $region24
        $region23: #{tpu_custom_call.1} parent=15 // pred_region
          %s156 = sand.u32 %s69, 1
          %s157 = scalar_lea.sflag [#allocation6], %s156
          %s158 = sand.u32 %s69, 1
          %s159 = smul.addr %s158, 8
          %s160 = scalar_lea.vmem [#allocation5], %s159
          %s162 = ssub.s32 128, 128
          %163 = vsyncadd %s157, %s162
          %s164 = smul.addr %s25, 2
          %s165 = smul.addr %s24, 2
          %s166 = sadd.s32 %s164, %s165
          %s167 = smul.addr %s166, 64
          %s168 = scalar_lea.hbm %s1, %s167
          %s170 = sshll.u32 %s160, 4
          %s171 = int_to_ptr.vmem [resolvable:$true] %s170
          %173 = dma.hbm_to_vmem [thread:$0]  %s168, 128, %s171, %s157
        $region24: #{tpu_custom_call.1} parent=15 // pred_fallthru
          _
      $region16: #{tpu_custom_call.1} parent=5 // pred_fallthru
        _
      %p174 = scmp.le.s32.totalorder 1, %s17
      %p175 = scmp.lt.s32.totalorder %s17, 3
      %p176 = pnand %p174, %p175
      %p177 = pneg %p176
      // Predicated region
      $region25: #{tpu_custom_call.1} parent=5 // pred_check
        _
      $region26: #{tpu_custom_call.1} parent=5 // pred_check_branch
        %179 = sbr.rel (%p176) target = $region28
      $region27: #{tpu_custom_call.1} parent=5 // pred_region
        %s180 = ssub.s32 %s17, 1
        %s181 = sand.u32 %s44, 1
        %s182 = scalar_lea.sflag [#allocation3], %s181
        %s183 = sand.u32 %s44, 1
        %s184 = smul.addr %s183, 8
        %s185 = scalar_lea.vmem [#allocation2], %s184
        // Predicated region
        $region29: #{tpu_custom_call.1} parent=27 // pred_check
          %p186 = pneg %p57
        $region30: #{tpu_custom_call.1} parent=27 // pred_check_branch
          %188 = sbr.rel (%p186) target = $region32
        $region31: #{tpu_custom_call.1} parent=27 // pred_region
          %189 = dma.done %s182, 128
        $region32: #{tpu_custom_call.1} parent=27 // pred_fallthru
          _
        %s190 = sand.u32 %s72, 1
        %s191 = scalar_lea.sflag [#allocation6], %s190
        %s192 = sand.u32 %s72, 1
        %s193 = smul.addr %s192, 8
        %s194 = scalar_lea.vmem [#allocation5], %s193
        // Predicated region
        $region33: #{tpu_custom_call.1} parent=27 // pred_check
          %p195 = pneg %p85
        $region34: #{tpu_custom_call.1} parent=27 // pred_check_branch
          %197 = sbr.rel (%p195) target = $region36
        $region35: #{tpu_custom_call.1} parent=27 // pred_region
          %198 = dma.done %s191, 128
        $region36: #{tpu_custom_call.1} parent=27 // pred_fallthru
          _
        %s199 = sand.u32 %s44, 1
        %s200 = scalar_lea.sflag [#allocation3], %s199
        %s201 = sand.u32 %s44, 1
        %s202 = smul.addr %s201, 8
        %s203 = scalar_lea.vmem [#allocation2], %s202
        %p204 = pneg %p57
        %p205 = pneg %p54
        %s206 = sand.u32 %s72, 1
        %s207 = scalar_lea.sflag [#allocation6], %s206
        %s208 = sand.u32 %s72, 1
        %s209 = smul.addr %s208, 8
        %s210 = scalar_lea.vmem [#allocation5], %s209
        %p211 = pneg %p85
        %p212 = pneg %p82
        %p213 = pneg %p113
        %p214 = pneg %p110
        %s215 = sand.u32 %s100, 1
        %s216 = scalar_lea.sflag [#allocation4], %s215
        %s217 = sand.u32 %s100, 1
        %s218 = smul.addr %s217, 8
        %s219 = scalar_lea.vmem [#allocation7], %s218
        %v220 = vld [vmem:[%s185] sm:$0xff]
        %v221 = vld [vmem:[%s194] sm:$0xff]
        %v223 = vcombine.high %v220, %v220
        %vm225 = vcmask 1043456
        %v226 = vsel %vm225, %v220, 0.0
        %v227 = vsel %vm225, %v223, 0.0
        %v228 = vadd.f32 %v226, %v227
        %229 = vadd.xlane.f32.xlu0 %v228
        %v230 = vpop.xlane.xlu0 %229
        %v231 = vmul.f32 %v230, 0.00390625
        %v233 = vcombine.high %v221, %v221
        %v235 = vsel %vm225, %v221, 0.0
        %v236 = vsel %vm225, %v233, 0.0
        %v237 = vadd.f32 %v235, %v236
        %238 = vadd.xlane.f32.xlu0 %v237
        %v239 = vpop.xlane.xlu0 %238
        %v240 = vmul.f32 %v239, 0.00390625
        %v243 = vunpack.c.l.s4 839922192
        %v244 = vunpack.c.0.s8 %v243
        %v245 = vlaneseq
        %v246 = vshrl.u32 %v245, 7
        %v247 = vsub.s32 %v244, %v246
        %v248 = vrot.slane %v231, %v247
        %v250 = vsub.f32 %v220, %v248
        %v253 = vunpack.c.l.s4 839922192
        %v254 = vunpack.c.0.s8 %v253
        %v255 = vlaneseq
        %v256 = vshrl.u32 %v255, 7
        %v257 = vsub.s32 %v254, %v256
        %v258 = vrot.slane %v240, %v257
        %v260 = vsub.f32 %v221, %v258
        %v261 = vmul.f32 %v250, %v250
        %v263 = vcombine.high %v261, %v261
        %v265 = vsel %vm225, %v261, 0.0
        %v266 = vsel %vm225, %v263, 0.0
        %v267 = vadd.f32 %v265, %v266
        %268 = vadd.xlane.f32.xlu0 %v267
        %v269 = vpop.xlane.xlu0 %268
        %v270 = vmul.f32 %v269, 0.003921569
        %v271 = vadd.f32 %v270, 1e-05
        %v272 = vmul.f32 %v260, %v260
        %v274 = vcombine.high %v272, %v272
        %v276 = vsel %vm225, %v272, 0.0
        %v277 = vsel %vm225, %v274, 0.0
        %v278 = vadd.f32 %v276, %v277
        %279 = vadd.xlane.f32.xlu0 %v278
        %v280 = vpop.xlane.xlu0 %279
        %v281 = vmul.f32 %v280, 0.003921569
        %v282 = vadd.f32 %v281, 1e-05
        %v283 = vrsqrt.pop %v271
        %v284 = vrsqrt.pop %v282
        %v285 = vmul.f32 %v282, %v284
        %vm286 = vcmp.eq.f32.partialorder %v282, inf
        %v287 = vsel %vm286, %v282, %v285
        %vm288 = vcmp.eq.f32.partialorder %v282, 0.0
        %v289 = vand.u32 %v282, 2147483648
        %v290 = vsel %vm288, %v289, %v287
        %v291 = vmul.f32 %v290, %v283
        %v292 = vmul.f32 %v231, %v291
        %v293 = vsub.f32 %v240, %v292
        %v296 = vunpack.c.l.s4 839922192
        %v297 = vunpack.c.0.s8 %v296
        %v298 = vlaneseq
        %v299 = vshrl.u32 %v298, 7
        %v300 = vsub.s32 %v297, %v299
        %v301 = vrot.slane %v291, %v300
        %v303 = vmul.f32 %v220, %v301
        %v306 = vunpack.c.l.s4 839922192
        %v307 = vunpack.c.0.s8 %v306
        %v308 = vlaneseq
        %v309 = vshrl.u32 %v308, 7
        %v310 = vsub.s32 %v307, %v309
        %v311 = vrot.slane %v293, %v310
        %v313 = vadd.f32 %v303, %v311
        %314 = vst [vmem:[%s219] sm:$0xff] %v313
        %s315 = sand.u32 %s100, 1
        %s316 = scalar_lea.sflag [#allocation4], %s315
        %s317 = sand.u32 %s100, 1
        %s318 = smul.addr %s317, 8
        %s319 = scalar_lea.vmem [#allocation7], %s318
        // Predicated region
        $region37: #{tpu_custom_call.1} parent=27 // pred_check
          %p320 = pneg %p110
        $region38: #{tpu_custom_call.1} parent=27 // pred_check_branch
          %322 = sbr.rel (%p320) target = $region40
        $region39: #{tpu_custom_call.1} parent=27 // pred_region
          %s324 = ssub.s32 128, 128
          %325 = vsyncadd %s316, %s324
          %s326 = smul.addr %s27, 2
          %s327 = smul.addr %s26, 2
          %s328 = sadd.s32 %s326, %s327
          %s329 = smul.addr %s328, 64
          %s330 = scalar_lea.hbm %s2, %s329
          %s332 = sshll.u32 %s319, 4
          %s333 = int_to_ptr.vmem [resolvable:$true] %s332
          %335 = dma.vmem_to_hbm [thread:$0]  %s333, 128, %s330, %s316
        $region40: #{tpu_custom_call.1} parent=27 // pred_fallthru
          _
      $region28: #{tpu_custom_call.1} parent=5 // pred_fallthru
        _
      %p336 = scmp.le.s32.totalorder 2, %s17
      // Predicated region
      $region41: #{tpu_custom_call.1} parent=5 // pred_check
        %p337 = pneg %p336
      $region42: #{tpu_custom_call.1} parent=5 // pred_check_branch
        %339 = sbr.rel (%p337) target = $region44
      $region43: #{tpu_custom_call.1} parent=5 // pred_region
        %s340 = ssub.s32 %s17, 2
        // Predicated region
        $region45: #{tpu_custom_call.1} parent=43 // pred_check
          %p341 = pneg %p116
        $region46: #{tpu_custom_call.1} parent=43 // pred_check_branch
          %343 = sbr.rel (%p341) target = $region48
        $region47: #{tpu_custom_call.1} parent=43 // pred_region
          %s344 = sand.u32 %s101, 1
          %s345 = scalar_lea.sflag [#allocation4], %s344
          %s346 = sand.u32 %s101, 1
          %s347 = smul.addr %s346, 8
          %s348 = scalar_lea.vmem [#allocation7], %s347
          %349 = dma.done %s345, 128
        $region48: #{tpu_custom_call.1} parent=43 // pred_fallthru
          _
      $region44: #{tpu_custom_call.1} parent=5 // pred_fallthru
        _
    $region6: #{tpu_custom_call.1} parent=1 // loop_footer
      %s21 = sadd.s32 1, %s17
    $region7: #{tpu_custom_call.1} parent=1 // loop_footer_branch
      %16 = sbr.rel target = $region3
    $region8: #{tpu_custom_call.1} parent=1 // loop_exit
      _
    %350 = vsyncpa [#allocation3], 1
    %s351 = scalar_lea.sflag [#allocation3], 1
    %352 = vsyncpa %s351, 1
    %353 = vsyncpa [#allocation6], 1
    %s354 = scalar_lea.sflag [#allocation6], 1
    %355 = vsyncpa %s354, 1
    %356 = vsyncpa [#allocation4], 1
    %s357 = scalar_lea.sflag [#allocation4], 1
    %358 = vsyncpa %s357, 1

</llo_original>
